<compile_context>
chip_gen: v7x
topology: tpu7x:2x2x1
jax: 0.10.0
libtpu: 0.0.40
codegen_flags: <defaults>
</compile_context>

<pallas_src>
import math

import jax
import jax.numpy as jnp
from jax.experimental import pallas as pl
from jax.experimental.pallas import tpu as pltpu


def _round_up(x, m):
    return (x + m - 1) // m * m


# ----------------------------------------------------------------------------
# Kernel
# ----------------------------------------------------------------------------
def make_style_token_kernel(layout):
    """Build the kernel with the slab layout baked in as static offsets."""
    ref_dim = layout["ref_dim"]
    HT = layout["HT"]
    F = layout["F"]
    r_wqk = layout["r_wqk"]
    r_sbias = layout["r_sbias"]
    r_mblk = layout["r_mblk"]
    r_vwo = layout["r_vwo"]

    def kernel(x_ref, slab_ref, out_ref):
        f32 = jnp.float32

        # Static, 8-aligned row slices of the constant slab (free views).
        wqk = slab_ref[r_wqk:r_wqk + ref_dim, 0:HT]       # (ref_dim, H*T)
        sbias = slab_ref[r_sbias:r_sbias + 1, 0:HT]       # (1, H*T)
        mblk = slab_ref[r_mblk:r_mblk + HT, 0:HT]         # (H*T, H*T)
        vwo = slab_ref[r_vwo:r_vwo + HT, 0:F]             # (H*T, F)  (bo folded in)

        # Per-head attention scores for the single query position, all heads
        # packed along the lane axis: (rows, H*T).  Q projection + scale + K^T
        # are pre-folded into wqk / sbias.
        s = jnp.dot(x_ref[...], wqk, preferred_element_type=f32) + sbias

        # Per-head softmax.  A single per-row (global) max shift is valid for
        # every head block since softmax is shift-invariant per block.
        m = jnp.max(s, axis=-1, keepdims=True)
        p = jnp.exp(s - m)

        # Per-head denominators, broadcast back to every lane of the same
        # head block via a block-mask matmul (no lane->sublane relayouts).
        denom = jnp.dot(p, mblk, preferred_element_type=f32)
        # Guard: if a dominated head fully underflows (score gap > ~87 in
        # f32), clamp instead of producing Inf/NaN.  Exact math is unchanged
        # for any non-pathological inputs.
        denom = jnp.maximum(denom, jnp.float32(1e-30))
        attn = p * pl.reciprocal(denom, approx=False)

        # Context + output projection + output bias all fused:
        #   out = attn @ (blockdiag(V_h) @ wo + ones*bo/n_head)
        out_ref[...] = jnp.dot(attn, vwo,
                               preferred_element_type=f32).astype(out_ref.dtype)

    return kernel


# ----------------------------------------------------------------------------
# Parameter-only precompute (hoisted out of the kernel; once per param set)
# ----------------------------------------------------------------------------
def precompute_constants(params, *, n_head):
    """Fold all input-independent work into one constant slab.

    slab row layout (all offsets multiples of 8 -> aligned, copy-free views):
        [r_wqk   : +ref_dim)  lanes [0:HT)  : wqk   = wq @ blockdiag(K_h^T) * scale
        [r_sbias : +1      )  lanes [0:HT)  : sbias = bq @ blockdiag(K_h^T) * scale
        [r_mblk  : +HT     )  lanes [0:HT)  : same-head indicator mask
        [r_vwo   : +HT     )  lanes [0:F )  : blockdiag(V_h) @ wo + ones*bo/n_head
    """
    gst = jnp.tanh(params["gst"])                         # (T, dk)
    k = gst @ params["wk"] + params["bk"]                 # (T, F)
    v = gst @ params["wv"] + params["bv"]                 # (T, F)
    T, F = k.shape
    d = F // n_head
    HT = n_head * T
    scale = 1.0 / math.sqrt(d)
    ref_dim = params["wq"].shape[0]

    # Block-diagonal per-head K^T and V so one matmul covers all heads.
    kT_blk = jnp.zeros((F, HT), jnp.float32)
    v_blk = jnp.zeros((HT, F), jnp.float32)
    for h in range(n_head):
        kT_blk = kT_blk.at[h * d:(h + 1) * d, h * T:(h + 1) * T].set(
            k[:, h * d:(h + 1) * d].T)
        v_blk = v_blk.at[h * T:(h + 1) * T, h * d:(h + 1) * d].set(
            v[:, h * d:(h + 1) * d])

    # Fold Q projection + scale into the score matmul:
    #   scores = (x @ wq + bq) @ kT_blk * scale = x @ wqk + sbias
    wqk = (params["wq"] @ kT_blk) * scale                 # (ref_dim, H*T)
    sbias = (params["bq"] @ kT_blk) * scale               # (1, H*T)

    # Fold the output projection AND its bias into V:
    #   out = attn @ (v_blk @ wo) + bo
    # Every attn row sums to exactly n_head (H independent unmasked
    # softmaxes), so bo == attn @ (ones(HT,1) @ bo / n_head).
    # NOTE: this identity breaks if token masking is ever added.
    vwo = v_blk @ params["wo"] + (jnp.ones((HT, 1), jnp.float32)
                                  @ params["bo"]) / n_head   # (H*T, F)

    # Same-head indicator mask for per-head softmax denominators.
    blk_ids = jnp.arange(HT) // T
    m_block = (blk_ids[:, None] == blk_ids[None, :]).astype(jnp.float32)

    # Pack into one sublane-stacked slab (single input DMA).
    r_wqk = 0
    r_sbias = _round_up(r_wqk + ref_dim, 8)
    r_mblk = _round_up(r_sbias + 1, 8)
    r_vwo = _round_up(r_mblk + HT, 8)
    n_rows = _round_up(r_vwo + HT, 8)
    n_lanes = _round_up(max(HT, F), 128)
    slab = jnp.zeros((n_rows, n_lanes), jnp.float32)
    slab = slab.at[r_wqk:r_wqk + ref_dim, 0:HT].set(wqk)
    slab = slab.at[r_sbias:r_sbias + 1, 0:HT].set(sbias)
    slab = slab.at[r_mblk:r_mblk + HT, 0:HT].set(m_block)
    slab = slab.at[r_vwo:r_vwo + HT, 0:F].set(vwo)

    layout = dict(ref_dim=int(ref_dim), HT=int(HT), F=int(F),
                  r_wqk=r_wqk, r_sbias=r_sbias, r_mblk=r_mblk, r_vwo=r_vwo)
    return {"slab": slab, "layout": layout}


# ----------------------------------------------------------------------------
# Wrapper
# ----------------------------------------------------------------------------
def style_token_layer(ref_embeddings, consts, *, block_rows=None):
    """Fused StyleTokenLayer forward.

    block_rows=None (or B not a clean multiple) -> gridless, everything
    VMEM-resident (2 input DMAs total).  For large B pass block_rows as a
    multiple of 8 (aim 512-1024): a 1-D batch grid is used, the constant slab
    is fetched once and stays VMEM-resident, and the batch axis is marked
    "parallel" so v7x's second TensorCore participates.
    """
    slab = consts["slab"]
    layout = consts["layout"]
    B, ref_dim = ref_embeddings.shape
    F = layout["F"]
    kernel = make_style_token_kernel(layout)
    out_shape = jax.ShapeDtypeStruct((B, F), jnp.float32)

    use_grid = (block_rows is not None and block_rows % 8 == 0
                and B % block_rows == 0 and B > block_rows)

    if not use_grid:
        vmem = lambda: pl.BlockSpec(memory_space=pltpu.MemorySpace.VMEM)
        return pl.pallas_call(
            kernel,
            out_shape=out_shape,
            in_specs=[vmem(), vmem()],
            out_specs=vmem(),
        )(ref_embeddings, slab)

    grid = (B // block_rows,)
    return pl.pallas_call(
        kernel,
        out_shape=out_shape,
        grid=grid,
        in_specs=[
            pl.BlockSpec((block_rows, ref_dim), lambda i: (i, 0)),
            # Fixed index_map -> slab fetched once, resident across steps.
            pl.BlockSpec(slab.shape, lambda i: (0, 0)),
        ],
        out_specs=pl.BlockSpec((block_rows, F), lambda i: (i, 0)),
        compiler_params=pltpu.CompilerParams(
            dimension_semantics=("parallel",)),
    )(ref_embeddings, slab)


# ----------------------------------------------------------------------------
# Pure-JAX reference (mirrors the PyTorch module semantics)
# ----------------------------------------------------------------------------
def style_token_layer_reference(ref_embeddings, params, *, n_head):
    gst = jnp.tanh(params["gst"])                                   # (T, dk)
    B = ref_embeddings.shape[0]
    q = ref_embeddings @ params["wq"] + params["bq"][0]             # (B, F)
    k = gst @ params["wk"] + params["bk"][0]                        # (T, F)
    v = gst @ params["wv"] + params["bv"][0]                        # (T, F)
    F = q.shape[-1]
    dim = F // n_head
    qh = q.reshape(B, n_head, dim)                                  # (B, H, d)
    kh = k.reshape(-1, n_head, dim).transpose(1, 0, 2)              # (H, T, d)
    vh = v.reshape(-1, n_head, dim).transpose(1, 0, 2)              # (H, T, d)
    scores = jnp.einsum("bhd,htd->bht", qh, kh) / math.sqrt(dim)    # (B, H, T)
    attn = jax.nn.softmax(scores, axis=-1)
    ctx = jnp.einsum("bht,htd->bhd", attn, vh).reshape(B, F)        # (B, F)
    return ctx @ params["wo"] + params["bo"][0]


def init_params(key, ref_embed_dim, gst_tokens, gst_token_dim, gst_heads):
    dk = gst_token_dim // gst_heads
    ks = jax.random.split(key, 9)
    s = 0.1
    return {
        # torch.randn(gst_tokens, gst_token_dim // gst_heads)
        "gst": jax.random.normal(ks[0], (gst_tokens, dk), jnp.float32),
        # nn.Linear weights stored as (in, out); biases as (1, out)
        "wq": s * jax.random.normal(ks[1], (ref_embed_dim, gst_token_dim), jnp.float32),
        "bq": s * jax.random.normal(ks[2], (1, gst_token_dim), jnp.float32),
        "wk": s * jax.random.normal(ks[3], (dk, gst_token_dim), jnp.float32),
        "bk": s * jax.random.normal(ks[4], (1, gst_token_dim), jnp.float32),
        "wv": s * jax.random.normal(ks[5], (dk, gst_token_dim), jnp.float32),
        "bv": s * jax.random.normal(ks[6], (1, gst_token_dim), jnp.float32),
        "wo": s * jax.random.normal(ks[7], (gst_token_dim, gst_token_dim), jnp.float32),
        "bo": s * jax.random.normal(ks[8], (1, gst_token_dim), jnp.float32),
    }


if __name__ == "__main__":
    # Small shapes consistent with the module's forward:
    #   ref_embeddings: (B, ref_embed_dim); output: (B, gst_token_dim)
    ref_embed_dim = 32
    gst_tokens = 8
    gst_token_dim = 64
    gst_heads = 4

    key = jax.random.PRNGKey(0)
    k_param, k_in1, k_in2 = jax.random.split(key, 3)
    params = init_params(k_param, ref_embed_dim, gst_tokens, gst_token_dim,
                         gst_heads)

    # Param-only precompute (hoisted out of the kernel), then the fused kernel.
    consts = precompute_constants(params, n_head=gst_heads)

    # 1) Tiny-batch, gridless path (2 input DMAs total).
    B = 2
    x_small = jax.random.normal(k_in1, (B, ref_embed_dim), jnp.float32)
    out_small = jax.block_until_ready(style_token_layer(x_small, consts))
    ref_small = style_token_layer_reference(x_small, params, n_head=gst_heads)
    assert out_small.shape == (B, gst_token_dim)
    assert jnp.allclose(out_small, ref_small, rtol=1e-4, atol=1e-4), \
        "mismatch vs reference (gridless path)"

    # 2) Batched path: 1-D grid over rows, constants VMEM-resident, batch axis
    #    marked "parallel" (2x on v7x once batch-bound).  Kept small here just
    #    to exercise the gridded code path.
    B2, TB = 64, 32
    x_big = jax.random.normal(k_in2, (B2, ref_embed_dim), jnp.float32)
    out_big = jax.block_until_ready(
        style_token_layer(x_big, consts, block_rows=TB))
    ref_big = style_token_layer_reference(x_big, params, n_head=gst_heads)
    assert out_big.shape == (B2, gst_token_dim)
    assert jnp.allclose(out_big, ref_big, rtol=1e-4, atol=1e-4), \
        "mismatch vs reference (batched path)"

    print("KERNEL_OK")
</pallas_src>

<mosaic_0001>
module attributes {stable_mosaic.version = 11 : i64} {
  func.func @kernel(%arg0: memref<2x32xf32, #tpu.memory_space<vmem>>, %arg1: memref<104x128xf32, #tpu.memory_space<vmem>>, %arg2: memref<2x64xf32, #tpu.memory_space<vmem>>) attributes {dimension_semantics = [], scalar_prefetch = 0 : i64, scratch_operands = 0 : i64, tpu.core_type = #tpu.core_type<tc>} {
    %c0 = arith.constant 0 : index
    %c0_0 = arith.constant 0 : index
    %0 = vector.load %arg1[%c0, %c0_0] : memref<104x128xf32, #tpu.memory_space<vmem>>, vector<32x32xf32>
    %c32 = arith.constant 32 : index
    %c0_1 = arith.constant 0 : index
    %1 = vector.load %arg1[%c32, %c0_1] : memref<104x128xf32, #tpu.memory_space<vmem>>, vector<1x32xf32>
    %c40 = arith.constant 40 : index
    %c0_2 = arith.constant 0 : index
    %2 = vector.load %arg1[%c40, %c0_2] : memref<104x128xf32, #tpu.memory_space<vmem>>, vector<32x32xf32>
    %c72 = arith.constant 72 : index
    %c0_3 = arith.constant 0 : index
    %3 = vector.load %arg1[%c72, %c0_3] : memref<104x128xf32, #tpu.memory_space<vmem>>, vector<32x64xf32>
    %c0_4 = arith.constant 0 : index
    %c0_5 = arith.constant 0 : index
    %4 = vector.load %arg0[%c0_4, %c0_5] : memref<2x32xf32, #tpu.memory_space<vmem>>, vector<2x32xf32>
    %cst = arith.constant dense<0.000000e+00> : vector<2x32xf32>
    %5 = tpu.matmul %4, %0, %cst {dimension_numbers = #tpu.dot_dimension_numbers<[1], [0], [0], [1], [0, 0, 1, 1], [], []>} : vector<2x32xf32>, vector<32x32xf32>, vector<2x32xf32> -> vector<2x32xf32>
    %6 = vector.broadcast %1 : vector<1x32xf32> to vector<2x32xf32>
    %7 = arith.addf %5, %6 : vector<2x32xf32>
    %cst_6 = arith.constant dense<0xFF800000> : vector<2xf32>
    %8 = vector.multi_reduction <maximumf>, %7, %cst_6 [1] : vector<2x32xf32> to vector<2xf32>
    %9 = vector.shape_cast %8 : vector<2xf32> to vector<2x1xf32>
    %10 = vector.broadcast %9 : vector<2x1xf32> to vector<2x32xf32>
    %11 = arith.subf %7, %10 : vector<2x32xf32>
    %12 = math.exp %11 : vector<2x32xf32>
    %cst_7 = arith.constant dense<0.000000e+00> : vector<2x32xf32>
    %13 = tpu.matmul %12, %2, %cst_7 {dimension_numbers = #tpu.dot_dimension_numbers<[1], [0], [0], [1], [0, 0, 1, 1], [], []>} : vector<2x32xf32>, vector<32x32xf32>, vector<2x32xf32> -> vector<2x32xf32>
    %cst_8 = arith.constant 1.000000e-30 : f32
    %14 = vector.broadcast %cst_8 : f32 to vector<2x32xf32>
    %15 = arith.maximumf %13, %14 : vector<2x32xf32>
    %16 = tpu.reciprocal %15 : vector<2x32xf32> -> vector<2x32xf32>
    %17 = arith.mulf %12, %16 : vector<2x32xf32>
    %cst_9 = arith.constant dense<0.000000e+00> : vector<2x64xf32>
    %18 = tpu.matmul %17, %3, %cst_9 {dimension_numbers = #tpu.dot_dimension_numbers<[1], [0], [0], [1], [0, 0, 1, 1], [], []>} : vector<2x32xf32>, vector<32x64xf32>, vector<2x64xf32> -> vector<2x64xf32>
    %c0_10 = arith.constant 0 : index
    %c0_11 = arith.constant 0 : index
    %19 = vector.load %arg2[%c0_10, %c0_11] : memref<2x64xf32, #tpu.memory_space<vmem>>, vector<2x64xf32>
    tpu.vector_store %arg2[%c0_10, %c0_11], %18 {strides = array<i32>} : memref<2x64xf32, #tpu.memory_space<vmem>>, vector<2x64xf32>,
    return
  }
}

</mosaic_0001>

<llo_original>
// kernel: tpu_custom_call.1
$region0: #{tpu_custom_call.1}
  #allocation0 [shape = 'u32[]', space=smem, size = 0x4, offset = 0x4, fixed_abs, tag = 'smem constant byte address 0x4 - core index']
  #allocation1 [shape = 'u32[144,128]{1,0:T(1,128)}', space=vmem, size = 0x12000, scoped, tag = 'internal scratch']
  %s0 = inlined_call_operand.hbm [shape: f32[2,32], index: 0, kind: input, shape index: {}]
  %s1 = inlined_call_operand.hbm [shape: f32[104,128], index: 1, kind: input, shape index: {}]
  %s2 = inlined_call_operand.hbm [shape: f32[2,64], index: 2, kind: output, shape index: {}]
  %s3 = sld [smem:[#allocation0]]
  $region26: #{tpu_custom_call.1} parent=0
    _
  %s5 = ssub.s32 1, %s3
  %s6 = scalar_select 0, %s5, %s3
  $region1: #{tpu_custom_call.1} parent=0
    #allocation2 [shape = 'u8[1024]{0}', space=vmem, size = 0x400, scoped, tag = 'input window, operand 0, single buffered']
    #allocation3 [shape = 's32[1]{0}', space=sflag, size = 0x4, scoped, tag = 'scoped memory for tpu_custom_call.1']
    #allocation4 [shape = 's32[1]{0}', space=sflag, size = 0x4, scoped, tag = 'scoped memory for tpu_custom_call.1']
    #allocation5 [shape = 'u8[53248]{0}', space=vmem, size = 0xd000, scoped, tag = 'input window, operand 1, single buffered']
    #allocation6 [shape = 's32[1]{0}', space=sflag, size = 0x4, scoped, tag = 'scoped memory for tpu_custom_call.1']
    #allocation7 [shape = 'u8[1024]{0}', space=vmem, size = 0x400, scoped, tag = 'output window, operand 0, single buffered']
    %7 = vsyncpa [#allocation3], 0
    %8 = vsyncpa [#allocation6], 0
    %9 = vsyncpa [#allocation4], 0
    // Predicated region
    $region2: #{tpu_custom_call.1} parent=1 // pred_check
      _
    $region3: #{tpu_custom_call.1} parent=1 // pred_check_branch
      %11 = sbr.rel (0) target = $region5
    $region4: #{tpu_custom_call.1} parent=1 // pred_region
      %s13 = ssub.s32 32, 32
      %14 = vsyncadd [#allocation3], %s13
      %s16 = sshll.u32 [#allocation2], 4
      %s17 = int_to_ptr.vmem [resolvable:$true] %s16
      %19 = dma.hbm_to_vmem [thread:$0]  %s0, 32, %s17, [#allocation3]
    $region5: #{tpu_custom_call.1} parent=1 // pred_fallthru
      _
    // Predicated region
    $region6: #{tpu_custom_call.1} parent=1 // pred_check
      _
    $region7: #{tpu_custom_call.1} parent=1 // pred_check_branch
      %21 = sbr.rel (0) target = $region9
    $region8: #{tpu_custom_call.1} parent=1 // pred_region
      %s23 = ssub.s32 1664, 1664
      %24 = vsyncadd [#allocation6], %s23
      %s25 = sshll.u32 [#allocation5], 4
      %s26 = int_to_ptr.vmem [resolvable:$true] %s25
      %31 = dma.hbm_to_vmem [thread:$0]  %s1, 1664, %s26, [#allocation6], 128, 128, 8
    $region9: #{tpu_custom_call.1} parent=1 // pred_fallthru
      _
    // Predicated region
    $region10: #{tpu_custom_call.1} parent=1 // pred_check
      _
    $region11: #{tpu_custom_call.1} parent=1 // pred_check_branch
      %33 = sbr.rel (0) target = $region13
    $region12: #{tpu_custom_call.1} parent=1 // pred_region
      %34 = dma.done [#allocation3], 32
    $region13: #{tpu_custom_call.1} parent=1 // pred_fallthru
      _
    // Predicated region
    $region14: #{tpu_custom_call.1} parent=1 // pred_check
      _
    $region15: #{tpu_custom_call.1} parent=1 // pred_check_branch
      %36 = sbr.rel (0) target = $region17
    $region16: #{tpu_custom_call.1} parent=1 // pred_region
      %37 = dma.done [#allocation6], 1664
    $region17: #{tpu_custom_call.1} parent=1 // pred_fallthru
      _
    %v38 = vld [vmem:[#allocation5] sm:$0xff]
    %v39 = vld [vmem:[#allocation5 + $0x8] sm:$0xff]
    %v40 = vld [vmem:[#allocation5 + $0x10] sm:$0xff]
    %v41 = vld [vmem:[#allocation5 + $0x18] sm:$0xff]
    %v42 = vld [vmem:[#allocation5 + $0x20] sm:$0x1]
    %v43 = vld [vmem:[#allocation5 + $0x28] sm:$0xff]
    %v44 = vld [vmem:[#allocation5 + $0x30] sm:$0xff]
    %v45 = vld [vmem:[#allocation5 + $0x38] sm:$0xff]
    %v46 = vld [vmem:[#allocation5 + $0x40] sm:$0xff]
    %v47 = vld [vmem:[#allocation5 + $0x48] sm:$0xff]
    %v48 = vld [vmem:[#allocation5 + $0x50] sm:$0xff]
    %v49 = vld [vmem:[#allocation5 + $0x58] sm:$0xff]
    %v50 = vld [vmem:[#allocation5 + $0x60] sm:$0xff]
    %v51 = vld [vmem:[#allocation2] sm:$0x3]
    %v52 = vlaneseq
    %v53 = vshrl.u32 %v52, 7
    %v54 = vsub.s32 0, %v53
    %v55 = vrot.slane %v42, %v54
    %vm56 = vcmask 261120
    %v58 = vsel %vm56, %v51, 0
    %60 = vmatprep.subr.mxu0 0.0
    %61 = vmatpush1.msra.mxu0 %v38
    %62 = vmatprep.subr.mxu0 0.0
    %63 = vmatpush1.msra.mxu0 %v39
    %64 = vmatprep.subr.mxu0 0.0
    %65 = vmatpush1.msra.mxu0 %v40
    %66 = vmatprep.subr.mxu0 0.0
    %67 = vmatpush1.msra.mxu0 %v41
    %68 = vmatprep.subr.mxu0 0.0
    %69 = vmatpush1.msra.mxu0 0.0
    %70 = vmatprep.subr.mxu0 0.0
    %71 = vmatpush1.msra.mxu0 0.0
    %72 = vmatprep.subr.mxu0 0.0
    %73 = vmatpush1.msra.mxu0 0.0
    %74 = vmatprep.subr.mxu0 0.0
    %75 = vmatpush1.msra.mxu0 0.0
    %76 = vmatprep.subr.mxu0 0.0
    %77 = vmatpush1.msra.mxu0 0.0
    %78 = vmatprep.subr.mxu0 0.0
    %79 = vmatpush1.msra.mxu0 0.0
    %80 = vmatprep.subr.mxu0 0.0
    %81 = vmatpush1.msra.mxu0 0.0
    %82 = vmatprep.subr.mxu0 0.0
    %83 = vmatpush1.msra.mxu0 0.0
    %84 = vmatprep.subr.mxu0 0.0
    %85 = vmatpush1.msra.mxu0 0.0
    %86 = vmatprep.subr.mxu0 0.0
    %87 = vmatpush1.msra.mxu0 0.0
    %88 = vmatprep.subr.mxu0 0.0
    %89 = vmatpush1.msra.mxu0 0.0
    %90 = vmatprep.subr.mxu0 0.0
    %91 = vmatpush1.msra.mxu0 0.0
    %92 = vmatprep.subr.mxu0 0.0
    %93 = vmatpush1.msra.mxu0 0.0
    %94 = vmatprep.subr.mxu0 0.0
    %95 = vmatpush1.msra.mxu0 0.0
    %96 = vmatprep.subr.mxu0 0.0
    %97 = vmatpush1.msra.mxu0 0.0
    %98 = vmatprep.subr.mxu0 0.0
    %99 = vmatpush1.msra.mxu0 0.0
    %100 = vmatprep.subr.mxu0 0.0
    %101 = vmatpush1.msra.mxu0 0.0
    %102 = vmatprep.subr.mxu0 0.0
    %103 = vmatpush1.msra.mxu0 0.0
    %104 = vmatprep.subr.mxu0 0.0
    %105 = vmatpush1.msra.mxu0 0.0
    %106 = vmatprep.subr.mxu0 0.0
    %107 = vmatpush1.msra.mxu0 0.0
    %108 = vmatprep.subr.mxu0 0.0
    %109 = vmatpush1.msra.mxu0 0.0
    %110 = vmatprep.subr.mxu0 0.0
    %111 = vmatpush1.msra.mxu0 0.0
    %112 = vmatprep.subr.mxu0 0.0
    %113 = vmatpush1.msra.mxu0 0.0
    %114 = vmatprep.subr.mxu0 0.0
    %115 = vmatpush1.msra.mxu0 0.0
    %116 = vmatprep.subr.mxu0 0.0
    %117 = vmatpush1.msra.mxu0 0.0
    %118 = vmatprep.subr.mxu0 0.0
    %119 = vmatpush1.msra.mxu0 0.0
    %120 = vmatprep.subr.mxu0 0.0
    %121 = vmatpush1.msra.mxu0 0.0
    %122 = vmatprep.subr.mxu0 0.0
    %123 = vmatpush1.msra.mxu0 0.0
    %124 = vmatprep.mubr.f32.mxu0 0.0
    %125 = vmatmul.mubr.f32.gmra.mrb[0].mxu0 %v58
    %v126 = vpop.f32.mrb[0].mxu0
    %v127 = vadd.f32 %v55, %v126
    %v128 = vpop.f32.mrb[0].mxu0
    %129 = vdwg.mxu0
    %vm130 = vcmask 254976
    %v131 = vsel %vm130, %v127, -inf
    %132 = vmax.xlane.f32.xlu0 %v131
    %v133 = vpop.xlane.xlu0 %132
    %v134 = vsub.f32 %v127, %v133
    %v135 = vmul.f32 %v134, 1.442695
    %v136 = vpow.pop %v135
    %v138 = vsel %vm56, %v136, 0
    %140 = vmatprep.subr.mxu0 0.0
    %141 = vmatpush1.msra.mxu0 %v43
    %142 = vmatprep.subr.mxu0 0.0
    %143 = vmatpush1.msra.mxu0 %v44
    %144 = vmatprep.subr.mxu0 0.0
    %145 = vmatpush1.msra.mxu0 %v45
    %146 = vmatprep.subr.mxu0 0.0
    %147 = vmatpush1.msra.mxu0 %v46
    %148 = vmatprep.subr.mxu0 0.0
    %149 = vmatpush1.msra.mxu0 0.0
    %150 = vmatprep.subr.mxu0 0.0
    %151 = vmatpush1.msra.mxu0 0.0
    %152 = vmatprep.subr.mxu0 0.0
    %153 = vmatpush1.msra.mxu0 0.0
    %154 = vmatprep.subr.mxu0 0.0
    %155 = vmatpush1.msra.mxu0 0.0
    %156 = vmatprep.subr.mxu0 0.0
    %157 = vmatpush1.msra.mxu0 0.0
    %158 = vmatprep.subr.mxu0 0.0
    %159 = vmatpush1.msra.mxu0 0.0
    %160 = vmatprep.subr.mxu0 0.0
    %161 = vmatpush1.msra.mxu0 0.0
    %162 = vmatprep.subr.mxu0 0.0
    %163 = vmatpush1.msra.mxu0 0.0
    %164 = vmatprep.subr.mxu0 0.0
    %165 = vmatpush1.msra.mxu0 0.0
    %166 = vmatprep.subr.mxu0 0.0
    %167 = vmatpush1.msra.mxu0 0.0
    %168 = vmatprep.subr.mxu0 0.0
    %169 = vmatpush1.msra.mxu0 0.0
    %170 = vmatprep.subr.mxu0 0.0
    %171 = vmatpush1.msra.mxu0 0.0
    %172 = vmatprep.subr.mxu0 0.0
    %173 = vmatpush1.msra.mxu0 0.0
    %174 = vmatprep.subr.mxu0 0.0
    %175 = vmatpush1.msra.mxu0 0.0
    %176 = vmatprep.subr.mxu0 0.0
    %177 = vmatpush1.msra.mxu0 0.0
    %178 = vmatprep.subr.mxu0 0.0
    %179 = vmatpush1.msra.mxu0 0.0
    %180 = vmatprep.subr.mxu0 0.0
    %181 = vmatpush1.msra.mxu0 0.0
    %182 = vmatprep.subr.mxu0 0.0
    %183 = vmatpush1.msra.mxu0 0.0
    %184 = vmatprep.subr.mxu0 0.0
    %185 = vmatpush1.msra.mxu0 0.0
    %186 = vmatprep.subr.mxu0 0.0
    %187 = vmatpush1.msra.mxu0 0.0
    %188 = vmatprep.subr.mxu0 0.0
    %189 = vmatpush1.msra.mxu0 0.0
    %190 = vmatprep.subr.mxu0 0.0
    %191 = vmatpush1.msra.mxu0 0.0
    %192 = vmatprep.subr.mxu0 0.0
    %193 = vmatpush1.msra.mxu0 0.0
    %194 = vmatprep.subr.mxu0 0.0
    %195 = vmatpush1.msra.mxu0 0.0
    %196 = vmatprep.subr.mxu0 0.0
    %197 = vmatpush1.msra.mxu0 0.0
    %198 = vmatprep.subr.mxu0 0.0
    %199 = vmatpush1.msra.mxu0 0.0
    %200 = vmatprep.subr.mxu0 0.0
    %201 = vmatpush1.msra.mxu0 0.0
    %202 = vmatprep.subr.mxu0 0.0
    %203 = vmatpush1.msra.mxu0 0.0
    %204 = vmatprep.mubr.f32.mxu0 0.0
    %205 = vmatmul.mubr.f32.gmra.mrb[0].mxu0 %v138
    %v206 = vpop.f32.mrb[0].mxu0
    %v207 = vadd.f32 0.0, %v206
    %v208 = vpop.f32.mrb[0].mxu0
    %209 = vdwg.mxu0
    %v210 = vmax.f32 %v207, 1e-30
    %v211 = vrcp.pop %v210
    %v212 = vmul.f32 %v136, %v211
    %v214 = vsel %vm56, %v212, 0
    %216 = vmatprep.subr.mxu0 0.0
    %217 = vmatpush1.msra.mxu0 %v47
    %218 = vmatprep.subr.mxu0 0.0
    %219 = vmatpush1.msra.mxu0 %v48
    %220 = vmatprep.subr.mxu0 0.0
    %221 = vmatpush1.msra.mxu0 %v49
    %222 = vmatprep.subr.mxu0 0.0
    %223 = vmatpush1.msra.mxu0 %v50
    %224 = vmatprep.subr.mxu0 0.0
    %225 = vmatpush1.msra.mxu0 0.0
    %226 = vmatprep.subr.mxu0 0.0
    %227 = vmatpush1.msra.mxu0 0.0
    %228 = vmatprep.subr.mxu0 0.0
    %229 = vmatpush1.msra.mxu0 0.0
    %230 = vmatprep.subr.mxu0 0.0
    %231 = vmatpush1.msra.mxu0 0.0
    %232 = vmatprep.subr.mxu0 0.0
    %233 = vmatpush1.msra.mxu0 0.0
    %234 = vmatprep.subr.mxu0 0.0
    %235 = vmatpush1.msra.mxu0 0.0
    %236 = vmatprep.subr.mxu0 0.0
    %237 = vmatpush1.msra.mxu0 0.0
    %238 = vmatprep.subr.mxu0 0.0
    %239 = vmatpush1.msra.mxu0 0.0
    %240 = vmatprep.subr.mxu0 0.0
    %241 = vmatpush1.msra.mxu0 0.0
    %242 = vmatprep.subr.mxu0 0.0
    %243 = vmatpush1.msra.mxu0 0.0
    %244 = vmatprep.subr.mxu0 0.0
    %245 = vmatpush1.msra.mxu0 0.0
    %246 = vmatprep.subr.mxu0 0.0
    %247 = vmatpush1.msra.mxu0 0.0
    %248 = vmatprep.subr.mxu0 0.0
    %249 = vmatpush1.msra.mxu0 0.0
    %250 = vmatprep.subr.mxu0 0.0
    %251 = vmatpush1.msra.mxu0 0.0
    %252 = vmatprep.subr.mxu0 0.0
    %253 = vmatpush1.msra.mxu0 0.0
    %254 = vmatprep.subr.mxu0 0.0
    %255 = vmatpush1.msra.mxu0 0.0
    %256 = vmatprep.subr.mxu0 0.0
    %257 = vmatpush1.msra.mxu0 0.0
    %258 = vmatprep.subr.mxu0 0.0
    %259 = vmatpush1.msra.mxu0 0.0
    %260 = vmatprep.subr.mxu0 0.0
    %261 = vmatpush1.msra.mxu0 0.0
    %262 = vmatprep.subr.mxu0 0.0
    %263 = vmatpush1.msra.mxu0 0.0
    %264 = vmatprep.subr.mxu0 0.0
    %265 = vmatpush1.msra.mxu0 0.0
    %266 = vmatprep.subr.mxu0 0.0
    %267 = vmatpush1.msra.mxu0 0.0
    %268 = vmatprep.subr.mxu0 0.0
    %269 = vmatpush1.msra.mxu0 0.0
    %270 = vmatprep.subr.mxu0 0.0
    %271 = vmatpush1.msra.mxu0 0.0
    %272 = vmatprep.subr.mxu0 0.0
    %273 = vmatpush1.msra.mxu0 0.0
    %274 = vmatprep.subr.mxu0 0.0
    %275 = vmatpush1.msra.mxu0 0.0
    %276 = vmatprep.subr.mxu0 0.0
    %277 = vmatpush1.msra.mxu0 0.0
    %278 = vmatprep.subr.mxu0 0.0
    %279 = vmatpush1.msra.mxu0 0.0
    %280 = vmatprep.mubr.f32.mxu0 0.0
    %281 = vmatmul.mubr.f32.gmra.mrb[0].mxu0 %v214
    %v282 = vpop.f32.mrb[0].mxu0
    %v283 = vadd.f32 0.0, %v282
    %v284 = vpop.f32.mrb[0].mxu0
    %285 = vdwg.mxu0
    %vm286 = vcmask 517120
    %287 = vst.msk [vmem:[#allocation7] sm:$0x3] %vm286, %v283
    // Predicated region
    $region18: #{tpu_custom_call.1} parent=1 // pred_check
      _
    $region19: #{tpu_custom_call.1} parent=1 // pred_check_branch
      %289 = sbr.rel (0) target = $region21
    $region20: #{tpu_custom_call.1} parent=1 // pred_region
      %s291 = ssub.s32 32, 32
      %292 = vsyncadd [#allocation4], %s291
      %s294 = sshll.u32 [#allocation7], 4
      %s295 = int_to_ptr.vmem [resolvable:$true] %s294
      %297 = dma.vmem_to_hbm [thread:$0]  %s295, 32, %s2, [#allocation4]
    $region21: #{tpu_custom_call.1} parent=1 // pred_fallthru
      _
    // Predicated region
    $region22: #{tpu_custom_call.1} parent=1 // pred_check
      _
    $region23: #{tpu_custom_call.1} parent=1 // pred_check_branch
      %299 = sbr.rel (0) target = $region25
    $region24: #{tpu_custom_call.1} parent=1 // pred_region
      %300 = dma.done [#allocation4], 32
    $region25: #{tpu_custom_call.1} parent=1 // pred_fallthru
      _
    %301 = vsyncpa [#allocation3], 1
    %302 = vsyncpa [#allocation6], 1
    %303 = vsyncpa [#allocation4], 1

</llo_original>
